<compile_context>
chip_gen: v7x
topology: tpu7x:2x2x1
jax: 0.10.0
libtpu: 0.0.40
codegen_flags: <defaults>
</compile_context>

<pallas_src>
import functools
import math

import jax
import jax.numpy as jnp
from jax.experimental import pallas as pl
from jax.experimental.pallas import tpu as pltpu

WINDOW_SIZE = 10
INPUT_SIZE = 5
OUTPUT_SIZE = 2
HIDDEN = 32
NUM_LAYERS = 5                        # number of *extra* hidden Linear layers
D_IN = 1 + WINDOW_SIZE * INPUT_SIZE   # 51
PACK = 4                              # batch rows packed per 128-lane vreg row
D_PAD = 64                            # per-row input pad 51 -> 64 (PACK*64 = 256 lanes)
H_PACK = PACK * HIDDEN                # 128
O_PACK = PACK * OUTPUT_SIZE           # 8


def _cdiv(a, b):
    return -(-a // b)


def _round_up(n, m):
    return ((n + m - 1) // m) * m


def _has_native_bf16_vpu():
    """bf16 VPU/EUP exists on v6e/v7x; keep f32 tanh on v5e/v4 and older."""
    kind = jax.devices()[0].device_kind.lower()
    return not any(v in kind for v in ("v2", "v3", "v4", "v5"))


# ----------------------------------------------------------------------------
# Pallas kernel: full MLP forward for one tile of packed rows.
#   x_ref : (TP, 256) bf16   -- 4 original rows per packed row (each padded to 64)
#   w0    : (256, 128) bf16  -- block-diagonal (4 copies of padded W0^T)
#   wh    : (5, 128, 128) bf16 -- block-diagonal hidden weights
#   wl    : (128, 8) bf16    -- block-diagonal last-layer weight
#   biases: f32, tiled 4x along lanes
#   o_ref : (TP, 8) f32      -- 4 packed (2-wide) outputs per row
# ----------------------------------------------------------------------------
def mlp_kernel(x_ref, w0_ref, b0_ref, wh_ref, bh_ref, wl_ref, bl_ref, o_ref,
               *, bf16_act):
    x = x_ref[...]                                              # (TP, 256) bf16
    acc = jnp.dot(x, w0_ref[...], preferred_element_type=jnp.float32)

    if bf16_act:
        # v6e/v7x: native bf16 VPU/EUP -> bias-add and tanh in bf16 (half the
        # vregs / EUP pushes), and the bf16 result feeds the next dot directly.
        h = jnp.tanh(acc.astype(jnp.bfloat16)
                     + b0_ref[...].astype(jnp.bfloat16))
        for k in range(NUM_LAYERS):                             # static unroll
            acc = jnp.dot(h, wh_ref[k], preferred_element_type=jnp.float32)
            h = jnp.tanh(acc.astype(jnp.bfloat16)
                         + bh_ref[k].astype(jnp.bfloat16))
        o_ref[...] = (jnp.dot(h, wl_ref[...],
                              preferred_element_type=jnp.float32)
                      + bl_ref[...])
    else:
        # v5e/v4: no bf16 VPU/EUP -> keep bias-add/tanh in f32, cast to bf16
        # only for the MXU operands.
        h = jnp.tanh(acc + b0_ref[...])
        for k in range(NUM_LAYERS):
            acc = jnp.dot(h.astype(jnp.bfloat16), wh_ref[k],
                          preferred_element_type=jnp.float32)
            h = jnp.tanh(acc + bh_ref[k])
        o_ref[...] = (jnp.dot(h.astype(jnp.bfloat16), wl_ref[...],
                              preferred_element_type=jnp.float32)
                      + bl_ref[...])


# ----------------------------------------------------------------------------
# Wrapper: packs 4 rows per vreg row, tiles the packed batch dimension, and
# broadcasts the (tiny) block-diagonal weights to every tile.
# ----------------------------------------------------------------------------
def xv_predictor_forward(x, params, *, tm=4096, bf16_act=None):
    if bf16_act is None:
        bf16_act = _has_native_bf16_vpu()
    w0_bd, b0_bd, wh_bd, bh_bd, wl_bd, bl_bd = params

    B = x.shape[0]
    p_need = _cdiv(B, PACK)                     # packed rows actually needed
    tp_max = max(tm // PACK, 8)

    n_steps = _cdiv(p_need, tp_max)
    if n_steps == 1 and p_need >= 16:
        n_steps = 2                             # v7x: >=2 parallel steps -> both TCs
    tp = _round_up(_cdiv(p_need, n_steps), 8)   # packed rows per tile (sublane mult.)
    p_tot = n_steps * tp
    b_pad = p_tot * PACK                        # at most ~8 packed rows waste / step

    # Pad (rows to b_pad, cols 51->64), cast to bf16 and pack 4 rows per row.
    # This single fused XLA pass also replaces a separate f32->bf16 input cast.
    xp = jnp.pad(x, ((0, b_pad - B), (0, D_PAD - D_IN)))
    xp = xp.astype(jnp.bfloat16).reshape(p_tot, PACK * D_PAD)

    kernel = functools.partial(mlp_kernel, bf16_act=bf16_act)

    out = pl.pallas_call(
        kernel,
        out_shape=jax.ShapeDtypeStruct((p_tot, O_PACK), jnp.float32),
        grid_spec=pltpu.PrefetchScalarGridSpec(
            num_scalar_prefetch=0,
            grid=(n_steps,),
            in_specs=[
                pl.BlockSpec((tp, PACK * D_PAD), lambda i: (i, 0)),            # x packed
                pl.BlockSpec((PACK * D_PAD, H_PACK), lambda i: (0, 0)),        # W0 blockdiag
                pl.BlockSpec((1, H_PACK), lambda i: (0, 0)),                   # b0 tiled
                pl.BlockSpec((NUM_LAYERS, H_PACK, H_PACK), lambda i: (0, 0, 0)),  # Wh blockdiag
                pl.BlockSpec((NUM_LAYERS, 1, H_PACK), lambda i: (0, 0, 0)),       # bh tiled
                pl.BlockSpec((H_PACK, O_PACK), lambda i: (0, 0)),              # Wlast blockdiag
                pl.BlockSpec((1, O_PACK), lambda i: (0, 0)),                   # blast tiled
            ],
            out_specs=pl.BlockSpec((tp, O_PACK), lambda i: (i, 0)),
        ),
        compiler_params=pltpu.CompilerParams(
            dimension_semantics=("parallel",)),
    )(xp, w0_bd, b0_bd, wh_bd, bh_bd, wl_bd, bl_bd)

    # (P, 8) -> (4P, 2) is a free row-major reshape; slice off padding rows.
    return out.reshape(b_pad, OUTPUT_SIZE)[:B]


# ----------------------------------------------------------------------------
# Parameter init (mimics PyTorch Linear default U(-k, k), k = 1/sqrt(fan_in)),
# kept in f32 for the reference, plus packing into block-diagonal bf16 form.
# ----------------------------------------------------------------------------
def init_params(key):
    def linear_init(k, fan_in, fan_out):
        kw, kb = jax.random.split(k)
        bound = 1.0 / math.sqrt(fan_in)
        w = jax.random.uniform(kw, (fan_out, fan_in), jnp.float32, -bound, bound)
        b = jax.random.uniform(kb, (fan_out,), jnp.float32, -bound, bound)
        return w, b

    keys = jax.random.split(key, NUM_LAYERS + 2)
    layers = [linear_init(keys[0], D_IN, HIDDEN)]
    for k in range(NUM_LAYERS):
        layers.append(linear_init(keys[1 + k], HIDDEN, HIDDEN))
    layers.append(linear_init(keys[-1], HIDDEN, OUTPUT_SIZE))
    return layers


def _block_diag(w, n):
    din, dout = w.shape
    out = jnp.zeros((n * din, n * dout), w.dtype)
    for g in range(n):
        out = out.at[g * din:(g + 1) * din, g * dout:(g + 1) * dout].set(w)
    return out


def pack_params(layers):
    (w0, b0), hidden, (wl, bl) = layers[0], layers[1:-1], layers[-1]

    w0t = jnp.zeros((D_PAD, HIDDEN), jnp.float32).at[:D_IN, :].set(w0.T)  # pad 51->64
    w0_bd = _block_diag(w0t, PACK).astype(jnp.bfloat16)                   # (256, 128)
    b0_bd = jnp.tile(b0.reshape(1, HIDDEN), (1, PACK))                    # (1, 128) f32

    wh_bd = jnp.stack([_block_diag(w.T, PACK) for (w, _) in hidden]
                      ).astype(jnp.bfloat16)                              # (5, 128, 128)
    bh_bd = jnp.stack([jnp.tile(b.reshape(1, HIDDEN), (1, PACK))
                       for (_, b) in hidden])                             # (5, 1, 128) f32

    wl_bd = _block_diag(wl.T, PACK).astype(jnp.bfloat16)                  # (128, 8)
    bl_bd = jnp.tile(bl.reshape(1, OUTPUT_SIZE), (1, PACK))               # (1, 8) f32

    return (w0_bd, b0_bd, wh_bd, bh_bd, wl_bd, bl_bd)


# Pure-JAX f32 reference of the PyTorch forward (der=False) — true module
# semantics (f32 weights, f32 activations).  Kernel uses bf16 MXU operands
# (and bf16 tanh on v6e/v7x), hence the relaxed tolerance below.
def reference_forward(x, layers):
    h = x
    for (w, b) in layers[:-1]:
        h = jnp.tanh(h @ w.T + b)
    w, b = layers[-1]
    return h @ w.T + b


if __name__ == "__main__":
    key = jax.random.PRNGKey(0)
    k_param, k_x = jax.random.split(key)

    layers = init_params(k_param)
    params = pack_params(layers)

    B = 64  # small demo batch; wrapper packs/pads/tiles arbitrary B
    x = jax.random.normal(k_x, (B, D_IN), dtype=jnp.float32)

    fwd = jax.jit(lambda xx: xv_predictor_forward(xx, params))
    out = jax.block_until_ready(fwd(x))

    ref = reference_forward(x, layers)
    assert out.shape == (B, OUTPUT_SIZE)
    assert jnp.allclose(out, ref, atol=3e-2, rtol=3e-2), \
        f"mismatch vs f32 reference, max abs err = {jnp.max(jnp.abs(out - ref))}"

    # Non-multiple-of-PACK batch exercises the padding / tail path.
    out_small = jax.block_until_ready(xv_predictor_forward(x[:13], params))
    assert out_small.shape == (13, OUTPUT_SIZE)
    assert jnp.allclose(out_small, ref[:13], atol=3e-2, rtol=3e-2)

    print("KERNEL_OK")
</pallas_src>

<mosaic_0001>
module attributes {stable_mosaic.version = 11 : i64} {
  func.func @mlp_kernel(%arg0: i32, %arg1: memref<8x256xbf16, #tpu.memory_space<vmem>>, %arg2: memref<256x128xbf16, #tpu.memory_space<vmem>>, %arg3: memref<1x128xf32, #tpu.memory_space<vmem>>, %arg4: memref<5x128x128xbf16, #tpu.memory_space<vmem>>, %arg5: memref<5x1x128xf32, #tpu.memory_space<vmem>>, %arg6: memref<128x8xbf16, #tpu.memory_space<vmem>>, %arg7: memref<1x8xf32, #tpu.memory_space<vmem>>, %arg8: memref<8x8xf32, #tpu.memory_space<vmem>>) attributes {dimension_semantics = [#tpu.dimension_semantics<parallel>], iteration_bounds = array<i64: 2>, scalar_prefetch = 0 : i64, scratch_operands = 0 : i64, tpu.core_type = #tpu.core_type<tc>, window_params = [{transform_indices = @transform_0, window_bounds = array<i64: 8, 256>}, {pipeline_mode = #tpu.pipeline_mode<synchronous>, transform_indices = @transform_1, window_bounds = array<i64: 256, 128>}, {pipeline_mode = #tpu.pipeline_mode<synchronous>, transform_indices = @transform_2, window_bounds = array<i64: 1, 128>}, {pipeline_mode = #tpu.pipeline_mode<synchronous>, transform_indices = @transform_3, window_bounds = array<i64: 5, 128, 128>}, {pipeline_mode = #tpu.pipeline_mode<synchronous>, transform_indices = @transform_4, window_bounds = array<i64: 5, 1, 128>}, {pipeline_mode = #tpu.pipeline_mode<synchronous>, transform_indices = @transform_5, window_bounds = array<i64: 128, 8>}, {pipeline_mode = #tpu.pipeline_mode<synchronous>, transform_indices = @transform_6, window_bounds = array<i64: 1, 8>}, {transform_indices = @transform_7, window_bounds = array<i64: 8, 8>}]} {
    %c0 = arith.constant 0 : index
    %c0_0 = arith.constant 0 : index
    %0 = vector.load %arg1[%c0, %c0_0] : memref<8x256xbf16, #tpu.memory_space<vmem>>, vector<8x256xbf16>
    %c0_1 = arith.constant 0 : index
    %c0_2 = arith.constant 0 : index
    %1 = vector.load %arg2[%c0_1, %c0_2] : memref<256x128xbf16, #tpu.memory_space<vmem>>, vector<256x128xbf16>
    %cst = arith.constant dense<0.000000e+00> : vector<8x128xf32>
    %2 = tpu.matmul %0, %1, %cst {dimension_numbers = #tpu.dot_dimension_numbers<[1], [0], [0], [1], [0, 0, 1, 1], [], []>} : vector<8x256xbf16>, vector<256x128xbf16>, vector<8x128xf32> -> vector<8x128xf32>
    %3 = arith.truncf %2 : vector<8x128xf32> to vector<8x128xbf16>
    %c0_3 = arith.constant 0 : index
    %c0_4 = arith.constant 0 : index
    %4 = vector.load %arg3[%c0_3, %c0_4] : memref<1x128xf32, #tpu.memory_space<vmem>>, vector<1x128xf32>
    %5 = arith.truncf %4 : vector<1x128xf32> to vector<1x128xbf16>
    %6 = vector.broadcast %5 : vector<1x128xbf16> to vector<8x128xbf16>
    %7 = arith.addf %3, %6 : vector<8x128xbf16>
    %8 = math.tanh %7 : vector<8x128xbf16>
    %c0_5 = arith.constant 0 : index
    %c0_6 = arith.constant 0 : index
    %c0_7 = arith.constant 0 : index
    %9 = vector.load %arg4[%c0_5, %c0_6, %c0_7] : memref<5x128x128xbf16, #tpu.memory_space<vmem>>, vector<1x128x128xbf16>
    %10 = vector.shape_cast %9 : vector<1x128x128xbf16> to vector<128x128xbf16>
    %cst_8 = arith.constant dense<0.000000e+00> : vector<8x128xf32>
    %11 = tpu.matmul %8, %10, %cst_8 {dimension_numbers = #tpu.dot_dimension_numbers<[1], [0], [0], [1], [0, 0, 1, 1], [], []>} : vector<8x128xbf16>, vector<128x128xbf16>, vector<8x128xf32> -> vector<8x128xf32>
    %12 = arith.truncf %11 : vector<8x128xf32> to vector<8x128xbf16>
    %c0_9 = arith.constant 0 : index
    %c0_10 = arith.constant 0 : index
    %c0_11 = arith.constant 0 : index
    %13 = vector.load %arg5[%c0_9, %c0_10, %c0_11] : memref<5x1x128xf32, #tpu.memory_space<vmem>>, vector<1x1x128xf32>
    %14 = vector.shape_cast %13 : vector<1x1x128xf32> to vector<1x128xf32>
    %15 = arith.truncf %14 : vector<1x128xf32> to vector<1x128xbf16>
    %16 = vector.broadcast %15 : vector<1x128xbf16> to vector<8x128xbf16>
    %17 = arith.addf %12, %16 : vector<8x128xbf16>
    %18 = math.tanh %17 : vector<8x128xbf16>
    %c1 = arith.constant 1 : index
    %c0_12 = arith.constant 0 : index
    %c0_13 = arith.constant 0 : index
    %19 = vector.load %arg4[%c1, %c0_12, %c0_13] : memref<5x128x128xbf16, #tpu.memory_space<vmem>>, vector<1x128x128xbf16>
    %20 = vector.shape_cast %19 : vector<1x128x128xbf16> to vector<128x128xbf16>
    %cst_14 = arith.constant dense<0.000000e+00> : vector<8x128xf32>
    %21 = tpu.matmul %18, %20, %cst_14 {dimension_numbers = #tpu.dot_dimension_numbers<[1], [0], [0], [1], [0, 0, 1, 1], [], []>} : vector<8x128xbf16>, vector<128x128xbf16>, vector<8x128xf32> -> vector<8x128xf32>
    %22 = arith.truncf %21 : vector<8x128xf32> to vector<8x128xbf16>
    %c1_15 = arith.constant 1 : index
    %c0_16 = arith.constant 0 : index
    %c0_17 = arith.constant 0 : index
    %23 = vector.load %arg5[%c1_15, %c0_16, %c0_17] : memref<5x1x128xf32, #tpu.memory_space<vmem>>, vector<1x1x128xf32>
    %24 = vector.shape_cast %23 : vector<1x1x128xf32> to vector<1x128xf32>
    %25 = arith.truncf %24 : vector<1x128xf32> to vector<1x128xbf16>
    %26 = vector.broadcast %25 : vector<1x128xbf16> to vector<8x128xbf16>
    %27 = arith.addf %22, %26 : vector<8x128xbf16>
    %28 = math.tanh %27 : vector<8x128xbf16>
    %c2 = arith.constant 2 : index
    %c0_18 = arith.constant 0 : index
    %c0_19 = arith.constant 0 : index
    %29 = vector.load %arg4[%c2, %c0_18, %c0_19] : memref<5x128x128xbf16, #tpu.memory_space<vmem>>, vector<1x128x128xbf16>
    %30 = vector.shape_cast %29 : vector<1x128x128xbf16> to vector<128x128xbf16>
    %cst_20 = arith.constant dense<0.000000e+00> : vector<8x128xf32>
    %31 = tpu.matmul %28, %30, %cst_20 {dimension_numbers = #tpu.dot_dimension_numbers<[1], [0], [0], [1], [0, 0, 1, 1], [], []>} : vector<8x128xbf16>, vector<128x128xbf16>, vector<8x128xf32> -> vector<8x128xf32>
    %32 = arith.truncf %31 : vector<8x128xf32> to vector<8x128xbf16>
    %c2_21 = arith.constant 2 : index
    %c0_22 = arith.constant 0 : index
    %c0_23 = arith.constant 0 : index
    %33 = vector.load %arg5[%c2_21, %c0_22, %c0_23] : memref<5x1x128xf32, #tpu.memory_space<vmem>>, vector<1x1x128xf32>
    %34 = vector.shape_cast %33 : vector<1x1x128xf32> to vector<1x128xf32>
    %35 = arith.truncf %34 : vector<1x128xf32> to vector<1x128xbf16>
    %36 = vector.broadcast %35 : vector<1x128xbf16> to vector<8x128xbf16>
    %37 = arith.addf %32, %36 : vector<8x128xbf16>
    %38 = math.tanh %37 : vector<8x128xbf16>
    %c3 = arith.constant 3 : index
    %c0_24 = arith.constant 0 : index
    %c0_25 = arith.constant 0 : index
    %39 = vector.load %arg4[%c3, %c0_24, %c0_25] : memref<5x128x128xbf16, #tpu.memory_space<vmem>>, vector<1x128x128xbf16>
    %40 = vector.shape_cast %39 : vector<1x128x128xbf16> to vector<128x128xbf16>
    %cst_26 = arith.constant dense<0.000000e+00> : vector<8x128xf32>
    %41 = tpu.matmul %38, %40, %cst_26 {dimension_numbers = #tpu.dot_dimension_numbers<[1], [0], [0], [1], [0, 0, 1, 1], [], []>} : vector<8x128xbf16>, vector<128x128xbf16>, vector<8x128xf32> -> vector<8x128xf32>
    %42 = arith.truncf %41 : vector<8x128xf32> to vector<8x128xbf16>
    %c3_27 = arith.constant 3 : index
    %c0_28 = arith.constant 0 : index
    %c0_29 = arith.constant 0 : index
    %43 = vector.load %arg5[%c3_27, %c0_28, %c0_29] : memref<5x1x128xf32, #tpu.memory_space<vmem>>, vector<1x1x128xf32>
    %44 = vector.shape_cast %43 : vector<1x1x128xf32> to vector<1x128xf32>
    %45 = arith.truncf %44 : vector<1x128xf32> to vector<1x128xbf16>
    %46 = vector.broadcast %45 : vector<1x128xbf16> to vector<8x128xbf16>
    %47 = arith.addf %42, %46 : vector<8x128xbf16>
    %48 = math.tanh %47 : vector<8x128xbf16>
    %c4 = arith.constant 4 : index
    %c0_30 = arith.constant 0 : index
    %c0_31 = arith.constant 0 : index
    %49 = vector.load %arg4[%c4, %c0_30, %c0_31] : memref<5x128x128xbf16, #tpu.memory_space<vmem>>, vector<1x128x128xbf16>
    %50 = vector.shape_cast %49 : vector<1x128x128xbf16> to vector<128x128xbf16>
    %cst_32 = arith.constant dense<0.000000e+00> : vector<8x128xf32>
    %51 = tpu.matmul %48, %50, %cst_32 {dimension_numbers = #tpu.dot_dimension_numbers<[1], [0], [0], [1], [0, 0, 1, 1], [], []>} : vector<8x128xbf16>, vector<128x128xbf16>, vector<8x128xf32> -> vector<8x128xf32>
    %52 = arith.truncf %51 : vector<8x128xf32> to vector<8x128xbf16>
    %c4_33 = arith.constant 4 : index
    %c0_34 = arith.constant 0 : index
    %c0_35 = arith.constant 0 : index
    %53 = vector.load %arg5[%c4_33, %c0_34, %c0_35] : memref<5x1x128xf32, #tpu.memory_space<vmem>>, vector<1x1x128xf32>
    %54 = vector.shape_cast %53 : vector<1x1x128xf32> to vector<1x128xf32>
    %55 = arith.truncf %54 : vector<1x128xf32> to vector<1x128xbf16>
    %56 = vector.broadcast %55 : vector<1x128xbf16> to vector<8x128xbf16>
    %57 = arith.addf %52, %56 : vector<8x128xbf16>
    %58 = math.tanh %57 : vector<8x128xbf16>
    %c0_36 = arith.constant 0 : index
    %c0_37 = arith.constant 0 : index
    %59 = vector.load %arg6[%c0_36, %c0_37] : memref<128x8xbf16, #tpu.memory_space<vmem>>, vector<128x8xbf16>
    %cst_38 = arith.constant dense<0.000000e+00> : vector<8x8xf32>
    %60 = tpu.matmul %58, %59, %cst_38 {dimension_numbers = #tpu.dot_dimension_numbers<[1], [0], [0], [1], [0, 0, 1, 1], [], []>} : vector<8x128xbf16>, vector<128x8xbf16>, vector<8x8xf32> -> vector<8x8xf32>
    %c0_39 = arith.constant 0 : index
    %c0_40 = arith.constant 0 : index
    %61 = vector.load %arg7[%c0_39, %c0_40] : memref<1x8xf32, #tpu.memory_space<vmem>>, vector<1x8xf32>
    %62 = vector.broadcast %61 : vector<1x8xf32> to vector<8x8xf32>
    %63 = arith.addf %60, %62 : vector<8x8xf32>
    %c0_41 = arith.constant 0 : index
    %c0_42 = arith.constant 0 : index
    %64 = vector.load %arg8[%c0_41, %c0_42] : memref<8x8xf32, #tpu.memory_space<vmem>>, vector<8x8xf32>
    tpu.vector_store %arg8[%c0_41, %c0_42], %63 {strides = array<i32>} : memref<8x8xf32, #tpu.memory_space<vmem>>, vector<8x8xf32>,
    return
  }
  func.func @transform_0(%arg0: i32) -> (i32, i32) {
    %c0_i32 = arith.constant 0 : i32
    %c0_i32_0 = arith.constant 0 : i32
    return %arg0, %c0_i32 : i32, i32
  }
  func.func @transform_1(%arg0: i32) -> (i32, i32) {
    %c0_i32 = arith.constant 0 : i32
    %c0_i32_0 = arith.constant 0 : i32
    %c0_i32_1 = arith.constant 0 : i32
    return %c0_i32, %c0_i32_0 : i32, i32
  }
  func.func @transform_2(%arg0: i32) -> (i32, i32) {
    %c0_i32 = arith.constant 0 : i32
    %c0_i32_0 = arith.constant 0 : i32
    %c0_i32_1 = arith.constant 0 : i32
    return %c0_i32, %c0_i32_0 : i32, i32
  }
  func.func @transform_3(%arg0: i32) -> (i32, i32, i32) {
    %c0_i32 = arith.constant 0 : i32
    %c0_i32_0 = arith.constant 0 : i32
    %c0_i32_1 = arith.constant 0 : i32
    %c0_i32_2 = arith.constant 0 : i32
    return %c0_i32, %c0_i32_0, %c0_i32_1 : i32, i32, i32
  }
  func.func @transform_4(%arg0: i32) -> (i32, i32, i32) {
    %c0_i32 = arith.constant 0 : i32
    %c0_i32_0 = arith.constant 0 : i32
    %c0_i32_1 = arith.constant 0 : i32
    %c0_i32_2 = arith.constant 0 : i32
    return %c0_i32, %c0_i32_0, %c0_i32_1 : i32, i32, i32
  }
  func.func @transform_5(%arg0: i32) -> (i32, i32) {
    %c0_i32 = arith.constant 0 : i32
    %c0_i32_0 = arith.constant 0 : i32
    %c0_i32_1 = arith.constant 0 : i32
    return %c0_i32, %c0_i32_0 : i32, i32
  }
  func.func @transform_6(%arg0: i32) -> (i32, i32) {
    %c0_i32 = arith.constant 0 : i32
    %c0_i32_0 = arith.constant 0 : i32
    %c0_i32_1 = arith.constant 0 : i32
    return %c0_i32, %c0_i32_0 : i32, i32
  }
  func.func @transform_7(%arg0: i32) -> (i32, i32) {
    %c0_i32 = arith.constant 0 : i32
    %c0_i32_0 = arith.constant 0 : i32
    return %arg0, %c0_i32 : i32, i32
  }
}

</mosaic_0001>

<llo_original>
// kernel: _lambda_.1
$region0: #{_lambda_.1}
  #allocation0 [shape = 'u32[]', space=smem, size = 0x4, offset = 0x4, fixed_abs, tag = 'smem constant byte address 0x4 - core index']
  #allocation1 [shape = 'u32[144,128]{1,0:T(1,128)}', space=vmem, size = 0x12000, scoped, tag = 'internal scratch']
  %s0 = inlined_call_operand.vmem [shape: bf16[16,256], index: 0, kind: input, shape index: {}]
  %s1 = inlined_call_operand.vmem [shape: bf16[256,128], index: 1, kind: input, shape index: {}]
  %s2 = inlined_call_operand.vmem [shape: f32[1,128], index: 2, kind: input, shape index: {}]
  %s3 = inlined_call_operand.hbm [shape: bf16[5,128,128], index: 3, kind: input, shape index: {}]
  %s4 = inlined_call_operand.vmem [shape: f32[5,1,128], index: 4, kind: input, shape index: {}]
  %s5 = inlined_call_operand.vmem [shape: bf16[128,8], index: 5, kind: input, shape index: {}]
  %s6 = inlined_call_operand.vmem [shape: f32[1,8], index: 6, kind: input, shape index: {}]
  %s7 = inlined_call_operand.vmem [shape: f32[16,8], index: 7, kind: output, shape index: {}]
  %s8 = sld [smem:[#allocation0]]
  $region65: #{_lambda_.1} parent=0
    _
  %s10 = ssub.s32 1, %s8
  %s11 = scalar_select 0, %s10, %s8
  $region1: #{_lambda_.1} parent=0
    #allocation2 [shape = 'u8[163840]{0}', space=vmem, size = 0x28000, scoped, tag = 'input window, operand 3, single buffered']
    #allocation3 [shape = 's32[2]{0}', space=sflag, size = 0x8, scoped, tag = 'scoped memory for _lambda_.1']
    %12 = vsyncpa [#allocation3], 0
    loop: start=0, step=1, limit=4
    $region2: #{_lambda_.1} parent=1 // loop_pre_header
      _
    $region3: #{_lambda_.1} parent=1 // loop_header
      %s14 = sphi 0, %s18
      %p15 = scmp.ge.s32.totalorder %s14, 4
      %s24 = sphi 0, %s26
      %s27 = sphi 0, %s24
      %s28 = sphi 0, %s27
      %s44 = sphi 0, %s28
      %s48 = sphi 0, %s48
      %s50 = sphi 0, %s48
      %s51 = sphi 0, %s50
      %s65 = sphi 0, %s51
      %s69 = sphi 0, %s69
      %s71 = sphi 0, %s69
      %s72 = sphi 0, %s71
      %s86 = sphi 0, %s72
      %s90 = sphi 0, %s90
      %s92 = sphi 0, %s90
      %s93 = sphi 0, %s92
      %s107 = sphi 0, %s93
      %s111 = sphi 0, %s111
      %s113 = sphi 0, %s111
      %s114 = sphi 0, %s113
      %s128 = sphi 0, %s114
      %s132 = sphi 0, %s132
      %s134 = sphi 0, %s132
      %s135 = sphi 0, %s134
      %s149 = sphi 0, %s135
      %s153 = sphi 0, %s153
      %s155 = sphi 0, %s153
      %s156 = sphi 0, %s155
      %s170 = sphi 0, %s156
      %s176 = sphi 0, %s178
      %s179 = sphi 0, %s176
      %s180 = sphi 0, %s179
      %s196 = sphi 0, %s180
    $region4: #{_lambda_.1} parent=1 // loop_header_branch
      %17 = sbr.rel (%p15) target = $region8
    $region5: #{_lambda_.1} parent=1 // loop_body
      %s19 = ssub.s32 %s14, 1
      %s20 = ssub.s32 %s14, 2
      %s21 = sadd.s32 %s14, 1
      %s22 = ssub.s32 %s14, %s21
      %p23 = scmp.eq.s32.totalorder %s22, 0
      %s25 = sadd.s32 %s24, 1
      %s26 = scalar_select %p23, %s24, %s25
      %p29 = pneg %p23
      %p30 = scmp.eq.s32.totalorder %s14, 1
      %p31 = por %p29, %p30
      %p32 = scmp.ne.s32.totalorder %s24, %s27
      %p33 = scmp.eq.s32.totalorder %s14, 0
      %p34 = por %p32, %p33
      %p35 = scmp.ne.s32.totalorder %s24, %s27
      %p36 = scmp.eq.s32.totalorder %s19, 1
      %p37 = por %p35, %p36
      %p38 = scmp.ne.s32.totalorder %s27, %s28
      %p39 = scmp.eq.s32.totalorder %s19, 0
      %p40 = por %p38, %p39
      %p41 = scmp.ne.s32.totalorder %s27, %s28
      %p42 = scmp.eq.s32.totalorder %s20, 1
      %p43 = por %p41, %p42
      %p45 = scmp.ne.s32.totalorder %s28, %s44
      %p46 = scmp.eq.s32.totalorder %s20, 0
      %p47 = por %p45, %p46
      %s49 = sadd.s32 %s48, 1
      %p52 = scmp.eq.s32.totalorder %s14, 1
      %p53 = scmp.ne.s32.totalorder %s48, %s50
      %p54 = scmp.eq.s32.totalorder %s14, 0
      %p55 = por %p53, %p54
      %p56 = scmp.ne.s32.totalorder %s48, %s50
      %p57 = scmp.eq.s32.totalorder %s19, 1
      %p58 = por %p56, %p57
      %p59 = scmp.ne.s32.totalorder %s50, %s51
      %p60 = scmp.eq.s32.totalorder %s19, 0
      %p61 = por %p59, %p60
      %p62 = scmp.ne.s32.totalorder %s50, %s51
      %p63 = scmp.eq.s32.totalorder %s20, 1
      %p64 = por %p62, %p63
      %p66 = scmp.ne.s32.totalorder %s51, %s65
      %p67 = scmp.eq.s32.totalorder %s20, 0
      %p68 = por %p66, %p67
      %s70 = sadd.s32 %s69, 1
      %p73 = scmp.eq.s32.totalorder %s14, 1
      %p74 = scmp.ne.s32.totalorder %s69, %s71
      %p75 = scmp.eq.s32.totalorder %s14, 0
      %p76 = por %p74, %p75
      %p77 = scmp.ne.s32.totalorder %s69, %s71
      %p78 = scmp.eq.s32.totalorder %s19, 1
      %p79 = por %p77, %p78
      %p80 = scmp.ne.s32.totalorder %s71, %s72
      %p81 = scmp.eq.s32.totalorder %s19, 0
      %p82 = por %p80, %p81
      %p83 = scmp.ne.s32.totalorder %s71, %s72
      %p84 = scmp.eq.s32.totalorder %s20, 1
      %p85 = por %p83, %p84
      %p87 = scmp.ne.s32.totalorder %s72, %s86
      %p88 = scmp.eq.s32.totalorder %s20, 0
      %p89 = por %p87, %p88
      %s91 = sadd.s32 %s90, 1
      %p94 = scmp.eq.s32.totalorder %s14, 1
      %p95 = scmp.ne.s32.totalorder %s90, %s92
      %p96 = scmp.eq.s32.totalorder %s14, 0
      %p97 = por %p95, %p96
      %p98 = scmp.ne.s32.totalorder %s90, %s92
      %p99 = scmp.eq.s32.totalorder %s19, 1
      %p100 = por %p98, %p99
      %p101 = scmp.ne.s32.totalorder %s92, %s93
      %p102 = scmp.eq.s32.totalorder %s19, 0
      %p103 = por %p101, %p102
      %p104 = scmp.ne.s32.totalorder %s92, %s93
      %p105 = scmp.eq.s32.totalorder %s20, 1
      %p106 = por %p104, %p105
      %p108 = scmp.ne.s32.totalorder %s93, %s107
      %p109 = scmp.eq.s32.totalorder %s20, 0
      %p110 = por %p108, %p109
      %s112 = sadd.s32 %s111, 1
      %p115 = scmp.eq.s32.totalorder %s14, 1
      %p116 = scmp.ne.s32.totalorder %s111, %s113
      %p117 = scmp.eq.s32.totalorder %s14, 0
      %p118 = por %p116, %p117
      %p119 = scmp.ne.s32.totalorder %s111, %s113
      %p120 = scmp.eq.s32.totalorder %s19, 1
      %p121 = por %p119, %p120
      %p122 = scmp.ne.s32.totalorder %s113, %s114
      %p123 = scmp.eq.s32.totalorder %s19, 0
      %p124 = por %p122, %p123
      %p125 = scmp.ne.s32.totalorder %s113, %s114
      %p126 = scmp.eq.s32.totalorder %s20, 1
      %p127 = por %p125, %p126
      %p129 = scmp.ne.s32.totalorder %s114, %s128
      %p130 = scmp.eq.s32.totalorder %s20, 0
      %p131 = por %p129, %p130
      %s133 = sadd.s32 %s132, 1
      %p136 = scmp.eq.s32.totalorder %s14, 1
      %p137 = scmp.ne.s32.totalorder %s132, %s134
      %p138 = scmp.eq.s32.totalorder %s14, 0
      %p139 = por %p137, %p138
      %p140 = scmp.ne.s32.totalorder %s132, %s134
      %p141 = scmp.eq.s32.totalorder %s19, 1
      %p142 = por %p140, %p141
      %p143 = scmp.ne.s32.totalorder %s134, %s135
      %p144 = scmp.eq.s32.totalorder %s19, 0
      %p145 = por %p143, %p144
      %p146 = scmp.ne.s32.totalorder %s134, %s135
      %p147 = scmp.eq.s32.totalorder %s20, 1
      %p148 = por %p146, %p147
      %p150 = scmp.ne.s32.totalorder %s135, %s149
      %p151 = scmp.eq.s32.totalorder %s20, 0
      %p152 = por %p150, %p151
      %s154 = sadd.s32 %s153, 1
      %p157 = scmp.eq.s32.totalorder %s14, 1
      %p158 = scmp.ne.s32.totalorder %s153, %s155
      %p159 = scmp.eq.s32.totalorder %s14, 0
      %p160 = por %p158, %p159
      %p161 = scmp.ne.s32.totalorder %s153, %s155
      %p162 = scmp.eq.s32.totalorder %s19, 1
      %p163 = por %p161, %p162
      %p164 = scmp.ne.s32.totalorder %s155, %s156
      %p165 = scmp.eq.s32.totalorder %s19, 0
      %p166 = por %p164, %p165
      %p167 = scmp.ne.s32.totalorder %s155, %s156
      %p168 = scmp.eq.s32.totalorder %s20, 1
      %p169 = por %p167, %p168
      %p171 = scmp.ne.s32.totalorder %s156, %s170
      %p172 = scmp.eq.s32.totalorder %s20, 0
      %p173 = por %p171, %p172
      %s174 = ssub.s32 %s14, %s21
      %p175 = scmp.eq.s32.totalorder %s174, 0
      %s177 = sadd.s32 %s176, 1
      %s178 = scalar_select %p175, %s176, %s177
      %p181 = pneg %p175
      %p182 = scmp.eq.s32.totalorder %s14, 1
      %p183 = por %p181, %p182
      %p184 = scmp.ne.s32.totalorder %s176, %s179
      %p185 = scmp.eq.s32.totalorder %s14, 0
      %p186 = por %p184, %p185
      %p187 = scmp.ne.s32.totalorder %s176, %s179
      %p188 = scmp.eq.s32.totalorder %s19, 1
      %p189 = por %p187, %p188
      %p190 = scmp.ne.s32.totalorder %s179, %s180
      %p191 = scmp.eq.s32.totalorder %s19, 0
      %p192 = por %p190, %p191
      %p193 = scmp.ne.s32.totalorder %s179, %s180
      %p194 = scmp.eq.s32.totalorder %s20, 1
      %p195 = por %p193, %p194
      %p197 = scmp.ne.s32.totalorder %s180, %s196
      %p198 = scmp.eq.s32.totalorder %s20, 0
      %p199 = por %p197, %p198
      %p200 = scmp.le.s32.totalorder 1, %s14
      %p201 = scmp.lt.s32.totalorder %s14, 3
      %p202 = pnand %p200, %p201
      %p203 = pneg %p202
      // Predicated region
      $region9: #{_lambda_.1} parent=5 // pred_check
        _
      $region10: #{_lambda_.1} parent=5 // pred_check_branch
        %205 = sbr.rel (%p202) target = $region12
      $region11: #{_lambda_.1} parent=5 // pred_region
        %s206 = ssub.s32 %s14, 1
        // Predicated region
        $region13: #{_lambda_.1} parent=11 // pred_check
          %p207 = pneg %p61
        $region14: #{_lambda_.1} parent=11 // pred_check_branch
          %209 = sbr.rel (%p207) target = $region16
        $region15: #{_lambda_.1} parent=11 // pred_region
          _
        $region16: #{_lambda_.1} parent=11 // pred_fallthru
          _
        // Predicated region
        $region17: #{_lambda_.1} parent=11 // pred_check
          %p210 = pneg %p82
        $region18: #{_lambda_.1} parent=11 // pred_check_branch
          %212 = sbr.rel (%p210) target = $region20
        $region19: #{_lambda_.1} parent=11 // pred_region
          _
        $region20: #{_lambda_.1} parent=11 // pred_fallthru
          _
        // Predicated region
        $region21: #{_lambda_.1} parent=11 // pred_check
          %p213 = pneg %p103
        $region22: #{_lambda_.1} parent=11 // pred_check_branch
          %215 = sbr.rel (%p213) target = $region24
        $region23: #{_lambda_.1} parent=11 // pred_region
          %s217 = ssub.s32 5120, 5120
          %218 = vsyncadd [#allocation3], %s217
          %s219 = sshll.u32 [#allocation2], 4
          %s220 = int_to_ptr.vmem [resolvable:$true] %s219
          %225 = dma.hbm_to_vmem [thread:$0]  %s3, 5120, %s220, [#allocation3], 64, 64, 4
        $region24: #{_lambda_.1} parent=11 // pred_fallthru
          _
        // Predicated region
        $region25: #{_lambda_.1} parent=11 // pred_check
          %p226 = pneg %p124
        $region26: #{_lambda_.1} parent=11 // pred_check_branch
          %228 = sbr.rel (%p226) target = $region28
        $region27: #{_lambda_.1} parent=11 // pred_region
          _
        $region28: #{_lambda_.1} parent=11 // pred_fallthru
          _
        // Predicated region
        $region29: #{_lambda_.1} parent=11 // pred_check
          %p229 = pneg %p145
        $region30: #{_lambda_.1} parent=11 // pred_check_branch
          %231 = sbr.rel (%p229) target = $region32
        $region31: #{_lambda_.1} parent=11 // pred_region
          _
        $region32: #{_lambda_.1} parent=11 // pred_fallthru
          _
        // Predicated region
        $region33: #{_lambda_.1} parent=11 // pred_check
          %p232 = pneg %p166
        $region34: #{_lambda_.1} parent=11 // pred_check_branch
          %234 = sbr.rel (%p232) target = $region36
        $region35: #{_lambda_.1} parent=11 // pred_region
          _
        $region36: #{_lambda_.1} parent=11 // pred_fallthru
          _
      $region12: #{_lambda_.1} parent=5 // pred_fallthru
        _
      %p235 = scmp.lt.s32.totalorder %s14, 2
      // Predicated region
      $region37: #{_lambda_.1} parent=5 // pred_check
        %p236 = pneg %p235
      $region38: #{_lambda_.1} parent=5 // pred_check_branch
        %238 = sbr.rel (%p236) target = $region40
      $region39: #{_lambda_.1} parent=5 // pred_region
        // Predicated region
        $region41: #{_lambda_.1} parent=39 // pred_check
          %p239 = pneg %p34
        $region42: #{_lambda_.1} parent=39 // pred_check_branch
          %241 = sbr.rel (%p239) target = $region44
        $region43: #{_lambda_.1} parent=39 // pred_region
          %p242 = scmp.lt.s32.totalorder %s14, 1
          %s243 = scalar_select %p242, %s14, 1
          %s244 = smul.addr %s243, 2
          %s245 = smul.addr %s244, 4
          %s246 = scalar_lea.vmem %s0, %s245
        $region44: #{_lambda_.1} parent=39 // pred_fallthru
          _
      $region40: #{_lambda_.1} parent=5 // pred_fallthru
        _
      %p247 = scmp.le.s32.totalorder 1, %s14
      %p248 = scmp.lt.s32.totalorder %s14, 3
      %p249 = pnand %p247, %p248
      %p250 = pneg %p249
      // Predicated region
      $region45: #{_lambda_.1} parent=5 // pred_check
        _
      $region46: #{_lambda_.1} parent=5 // pred_check_branch
        %252 = sbr.rel (%p249) target = $region48
      $region47: #{_lambda_.1} parent=5 // pred_region
        %s253 = ssub.s32 %s14, 1
        // Predicated region
        $region49: #{_lambda_.1} parent=47 // pred_check
          %p254 = pneg %p103
        $region50: #{_lambda_.1} parent=47 // pred_check_branch
          %256 = sbr.rel (%p254) target = $region52
        $region51: #{_lambda_.1} parent=47 // pred_region
          %257 = dma.done [#allocation3], 5120
        $region52: #{_lambda_.1} parent=47 // pred_fallthru
          _
        %p258 = scmp.lt.s32.totalorder %s19, 1
        %s259 = scalar_select %p258, %s19, 1
        %s260 = smul.addr %s259, 2
        %s261 = smul.addr %s260, 4
        %s262 = scalar_lea.vmem %s0, %s261
        %p263 = pneg %p40
        %p264 = pneg %p37
        %p265 = pneg %p61
        %p266 = pneg %p58
        %p267 = pneg %p82
        %p268 = pneg %p79
        %p269 = pneg %p103
        %p270 = pneg %p100
        %p271 = pneg %p124
        %p272 = pneg %p121
        %p273 = pneg %p145
        %p274 = pneg %p142
        %p275 = pneg %p166
        %p276 = pneg %p163
        %p277 = pneg %p192
        %p278 = pneg %p189
        %p279 = scmp.lt.s32.totalorder %s19, 1
        %s280 = scalar_select %p279, %s19, 1
        %s281 = smul.addr %s280, 8
        %s282 = scalar_lea.vmem %s7, %s281
        %p283 = scmp.lt.s32.totalorder %s19, 1
        %s284 = scalar_select %p283, %s19, 1
        %s285 = smul.addr %s284, 2
        %s286 = smul.addr %s285, 4
        %s287 = scalar_lea.vmem %s0, %s286
        %p288 = scmp.lt.s32.totalorder %s19, 1
        %s289 = scalar_select %p288, %s19, 1
        %s290 = smul.addr %s289, 8
        %s291 = scalar_lea.vmem %s7, %s290
        %v293 = vld [vmem:[%s287] sm:$0xff]
        %v294 = vld [vmem:[%s1] sm:$0xf]
        %v295 = vld [vmem:[%s1 + $0x4] sm:$0xf]
        %v296 = vld [vmem:[%s1 + $0x8] sm:$0xf]
        %v297 = vld [vmem:[%s1 + $0xc] sm:$0xf]
        %v298 = vld [vmem:[%s1 + $0x10] sm:$0xf]
        %v299 = vld [vmem:[%s1 + $0x14] sm:$0xf]
        %v300 = vld [vmem:[%s1 + $0x18] sm:$0xf]
        %v301 = vld [vmem:[%s1 + $0x1c] sm:$0xf]
        %v302 = vld [vmem:[%s1 + $0x20] sm:$0xf]
        %v303 = vld [vmem:[%s1 + $0x24] sm:$0xf]
        %v304 = vld [vmem:[%s1 + $0x28] sm:$0xf]
        %v305 = vld [vmem:[%s1 + $0x2c] sm:$0xf]
        %v306 = vld [vmem:[%s1 + $0x30] sm:$0xf]
        %v307 = vld [vmem:[%s1 + $0x34] sm:$0xf]
        %v308 = vld [vmem:[%s1 + $0x38] sm:$0xf]
        %v309 = vld [vmem:[%s1 + $0x3c] sm:$0xf]
        %v310 = vld [vmem:[%s1 + $0x40] sm:$0xf]
        %v311 = vld [vmem:[%s1 + $0x44] sm:$0xf]
        %v312 = vld [vmem:[%s1 + $0x48] sm:$0xf]
        %v313 = vld [vmem:[%s1 + $0x4c] sm:$0xf]
        %v314 = vld [vmem:[%s1 + $0x50] sm:$0xf]
        %v315 = vld [vmem:[%s1 + $0x54] sm:$0xf]
        %v316 = vld [vmem:[%s1 + $0x58] sm:$0xf]
        %v317 = vld [vmem:[%s1 + $0x5c] sm:$0xf]
        %v318 = vld [vmem:[%s1 + $0x60] sm:$0xf]
        %v319 = vld [vmem:[%s1 + $0x64] sm:$0xf]
        %v320 = vld [vmem:[%s1 + $0x68] sm:$0xf]
        %v321 = vld [vmem:[%s1 + $0x6c] sm:$0xf]
        %v322 = vld [vmem:[%s1 + $0x70] sm:$0xf]
        %v323 = vld [vmem:[%s1 + $0x74] sm:$0xf]
        %v324 = vld [vmem:[%s1 + $0x78] sm:$0xf]
        %v325 = vld [vmem:[%s1 + $0x7c] sm:$0xf]
        %v327 = vunpack.c.l.b16 %v293
        %v328 = vunpack.c.h.b16 %v293
        %v329 = vpack.c.b16 %v327, %v327
        %v330 = vpack.c.b16 %v328, %v328
        %v365 = vunpack.c.l.b16 %v294
        %v366 = vunpack.c.l.b16 %v295
        %v367 = vunpack.c.l.b16 %v296
        %v368 = vunpack.c.l.b16 %v297
        %v369 = vunpack.c.l.b16 %v298
        %v370 = vunpack.c.l.b16 %v299
        %v371 = vunpack.c.l.b16 %v300
        %v372 = vunpack.c.l.b16 %v301
        %v373 = vunpack.c.l.b16 %v302
        %v374 = vunpack.c.l.b16 %v303
        %v375 = vunpack.c.l.b16 %v304
        %v376 = vunpack.c.l.b16 %v305
        %v377 = vunpack.c.l.b16 %v306
        %v378 = vunpack.c.l.b16 %v307
        %v379 = vunpack.c.l.b16 %v308
        %v380 = vunpack.c.l.b16 %v309
        %v381 = vunpack.c.l.b16 %v310
        %v382 = vunpack.c.l.b16 %v311
        %v383 = vunpack.c.l.b16 %v312
        %v384 = vunpack.c.l.b16 %v313
        %v385 = vunpack.c.l.b16 %v314
        %v386 = vunpack.c.l.b16 %v315
        %v387 = vunpack.c.l.b16 %v316
        %v388 = vunpack.c.l.b16 %v317
        %v389 = vunpack.c.l.b16 %v318
        %v390 = vunpack.c.l.b16 %v319
        %v391 = vunpack.c.l.b16 %v320
        %v392 = vunpack.c.l.b16 %v321
        %v393 = vunpack.c.l.b16 %v322
        %v394 = vunpack.c.l.b16 %v323
        %v395 = vunpack.c.l.b16 %v324
        %v396 = vunpack.c.l.b16 %v325
        %v397 = vpack.c.b16 %v366, %v365
        %v398 = vpack.c.b16 %v368, %v367
        %v399 = vpack.c.b16 %v370, %v369
        %v400 = vpack.c.b16 %v372, %v371
        %v401 = vpack.c.b16 %v374, %v373
        %v402 = vpack.c.b16 %v376, %v375
        %v403 = vpack.c.b16 %v378, %v377
        %v404 = vpack.c.b16 %v380, %v379
        %v405 = vpack.c.b16 %v382, %v381
        %v406 = vpack.c.b16 %v384, %v383
        %v407 = vpack.c.b16 %v386, %v385
        %v408 = vpack.c.b16 %v388, %v387
        %v409 = vpack.c.b16 %v390, %v389
        %v410 = vpack.c.b16 %v392, %v391
        %v411 = vpack.c.b16 %v394, %v393
        %v412 = vpack.c.b16 %v396, %v395
        %429 = vmatprep.subr.bf16.mxu0 0
        %430 = vmatpush1.bf16.msra.mxu0 %v397
        %431 = vmatprep.subr.bf16.mxu0 0
        %432 = vmatpush1.bf16.msra.mxu0 %v398
        %433 = vmatprep.subr.bf16.mxu0 0
        %434 = vmatpush1.bf16.msra.mxu0 %v399
        %435 = vmatprep.subr.bf16.mxu0 0
        %436 = vmatpush1.bf16.msra.mxu0 %v400
        %437 = vmatprep.subr.bf16.mxu0 0
        %438 = vmatpush1.bf16.msra.mxu0 %v401
        %439 = vmatprep.subr.bf16.mxu0 0
        %440 = vmatpush1.bf16.msra.mxu0 %v402
        %441 = vmatprep.subr.bf16.mxu0 0
        %442 = vmatpush1.bf16.msra.mxu0 %v403
        %443 = vmatprep.subr.bf16.mxu0 0
        %444 = vmatpush1.bf16.msra.mxu0 %v404
        %445 = vmatprep.subr.bf16.mxu0 0
        %446 = vmatpush1.bf16.msra.mxu0 %v405
        %447 = vmatprep.subr.bf16.mxu0 0
        %448 = vmatpush1.bf16.msra.mxu0 %v406
        %449 = vmatprep.subr.bf16.mxu0 0
        %450 = vmatpush1.bf16.msra.mxu0 %v407
        %451 = vmatprep.subr.bf16.mxu0 0
        %452 = vmatpush1.bf16.msra.mxu0 %v408
        %453 = vmatprep.subr.bf16.mxu0 0
        %454 = vmatpush1.bf16.msra.mxu0 %v409
        %455 = vmatprep.subr.bf16.mxu0 0
        %456 = vmatpush1.bf16.msra.mxu0 %v410
        %457 = vmatprep.subr.bf16.mxu0 0
        %458 = vmatpush1.bf16.msra.mxu0 %v411
        %459 = vmatprep.subr.bf16.mxu0 0
        %460 = vmatpush1.bf16.msra.mxu0 %v412
        %461 = vmatprep.mubr.bf16.mxu0 %v330
        %462 = vmatmul.mubr.bf16.gmra.mrb[0].mxu0 %v329
        %v463 = vpop.f32.mrb[0].mxu0
        %v464 = vadd.f32 0.0, %v463
        %v465 = vpop.f32.mrb[0].mxu0
        %v466 = vpop.f32.mrb[0].mxu0
        %v467 = vpop.f32.mrb[0].mxu0
        %468 = vdwg.mxu0
        %v469 = vpack.c.bf16 %v464, %v464
        %v470 = vld [vmem:[%s2] sm:$0x1]
        %v471 = vpack.c.bf16 %v470, %v470
        %v473 = vpack.i.b16 %v471, %v471
        %v475 = vlaneseq
        %v476 = vshrl.u32 %v475, 7
        %v477 = vsub.s32 0, %v476
        %v478 = vrot.slane %v473, %v477
        %v479 = vadd.bf16 %v469, %v478
        %v480 = vtanh.bf16.pop %v479
        %v481 = vld [vmem:[#allocation2] sm:$0xf]
        %v482 = vld [vmem:[#allocation2 + $0x4] sm:$0xf]
        %v483 = vld [vmem:[#allocation2 + $0x8] sm:$0xf]
        %v484 = vld [vmem:[#allocation2 + $0xc] sm:$0xf]
        %v485 = vld [vmem:[#allocation2 + $0x10] sm:$0xf]
        %v486 = vld [vmem:[#allocation2 + $0x14] sm:$0xf]
        %v487 = vld [vmem:[#allocation2 + $0x18] sm:$0xf]
        %v488 = vld [vmem:[#allocation2 + $0x1c] sm:$0xf]
        %v489 = vld [vmem:[#allocation2 + $0x20] sm:$0xf]
        %v490 = vld [vmem:[#allocation2 + $0x24] sm:$0xf]
        %v491 = vld [vmem:[#allocation2 + $0x28] sm:$0xf]
        %v492 = vld [vmem:[#allocation2 + $0x2c] sm:$0xf]
        %v493 = vld [vmem:[#allocation2 + $0x30] sm:$0xf]
        %v494 = vld [vmem:[#allocation2 + $0x34] sm:$0xf]
        %v495 = vld [vmem:[#allocation2 + $0x38] sm:$0xf]
        %v496 = vld [vmem:[#allocation2 + $0x3c] sm:$0xf]
        %v513 = vunpack.c.l.b16 %v481
        %v514 = vunpack.c.l.b16 %v482
        %v515 = vunpack.c.l.b16 %v483
        %v516 = vunpack.c.l.b16 %v484
        %v517 = vunpack.c.l.b16 %v485
        %v518 = vunpack.c.l.b16 %v486
        %v519 = vunpack.c.l.b16 %v487
        %v520 = vunpack.c.l.b16 %v488
        %v521 = vunpack.c.l.b16 %v489
        %v522 = vunpack.c.l.b16 %v490
        %v523 = vunpack.c.l.b16 %v491
        %v524 = vunpack.c.l.b16 %v492
        %v525 = vunpack.c.l.b16 %v493
        %v526 = vunpack.c.l.b16 %v494
        %v527 = vunpack.c.l.b16 %v495
        %v528 = vunpack.c.l.b16 %v496
        %v529 = vpack.c.b16 %v514, %v513
        %v530 = vpack.c.b16 %v516, %v515
        %v531 = vpack.c.b16 %v518, %v517
        %v532 = vpack.c.b16 %v520, %v519
        %v533 = vpack.c.b16 %v522, %v521
        %v534 = vpack.c.b16 %v524, %v523
        %v535 = vpack.c.b16 %v526, %v525
        %v536 = vpack.c.b16 %v528, %v527
        %545 = vmatprep.subr.bf16.mxu0 0
        %546 = vmatpush1.bf16.msra.mxu0 %v529
        %547 = vmatprep.subr.bf16.mxu0 0
        %548 = vmatpush1.bf16.msra.mxu0 %v530
        %549 = vmatprep.subr.bf16.mxu0 0
        %550 = vmatpush1.bf16.msra.mxu0 %v531
        %551 = vmatprep.subr.bf16.mxu0 0
        %552 = vmatpush1.bf16.msra.mxu0 %v532
        %553 = vmatprep.subr.bf16.mxu0 0
        %554 = vmatpush1.bf16.msra.mxu0 %v533
        %555 = vmatprep.subr.bf16.mxu0 0
        %556 = vmatpush1.bf16.msra.mxu0 %v534
        %557 = vmatprep.subr.bf16.mxu0 0
        %558 = vmatpush1.bf16.msra.mxu0 %v535
        %559 = vmatprep.subr.bf16.mxu0 0
        %560 = vmatpush1.bf16.msra.mxu0 %v536
        %561 = vmatprep.subr.bf16.mxu0 0
        %562 = vmatpush1.bf16.msra.mxu0 0
        %563 = vmatprep.subr.bf16.mxu0 0
        %564 = vmatpush1.bf16.msra.mxu0 0
        %565 = vmatprep.subr.bf16.mxu0 0
        %566 = vmatpush1.bf16.msra.mxu0 0
        %567 = vmatprep.subr.bf16.mxu0 0
        %568 = vmatpush1.bf16.msra.mxu0 0
        %569 = vmatprep.subr.bf16.mxu0 0
        %570 = vmatpush1.bf16.msra.mxu0 0
        %571 = vmatprep.subr.bf16.mxu0 0
        %572 = vmatpush1.bf16.msra.mxu0 0
        %573 = vmatprep.subr.bf16.mxu0 0
        %574 = vmatpush1.bf16.msra.mxu0 0
        %575 = vmatprep.subr.bf16.mxu0 0
        %576 = vmatpush1.bf16.msra.mxu0 0
        %577 = vmatprep.mubr.bf16.mxu0 0
        %578 = vmatmul.mubr.bf16.gmra.mrb[0].mxu0 %v480
        %v579 = vpop.f32.mrb[0].mxu0
        %v580 = vadd.f32 0.0, %v579
        %v581 = vpop.f32.mrb[0].mxu0
        %v582 = vpop.f32.mrb[0].mxu0
        %v583 = vpop.f32.mrb[0].mxu0
        %584 = vdwg.mxu0
        %v585 = vpack.c.bf16 %v580, %v580
        %v586 = vld [vmem:[%s4] sm:$0x1]
        %v587 = vpack.c.bf16 %v586, %v586
        %v589 = vpack.i.b16 %v587, %v587
        %v591 = vlaneseq
        %v592 = vshrl.u32 %v591, 7
        %v593 = vsub.s32 0, %v592
        %v594 = vrot.slane %v589, %v593
        %v595 = vadd.bf16 %v585, %v594
        %v596 = vtanh.bf16.pop %v595
        %s597 = scalar_lea.vmem [#allocation2], 64
        %v598 = vld [vmem:[%s597] sm:$0xf]
        %v599 = vld [vmem:[%s597 + $0x4] sm:$0xf]
        %v600 = vld [vmem:[%s597 + $0x8] sm:$0xf]
        %v601 = vld [vmem:[%s597 + $0xc] sm:$0xf]
        %v602 = vld [vmem:[%s597 + $0x10] sm:$0xf]
        %v603 = vld [vmem:[%s597 + $0x14] sm:$0xf]
        %v604 = vld [vmem:[%s597 + $0x18] sm:$0xf]
        %v605 = vld [vmem:[%s597 + $0x1c] sm:$0xf]
        %v606 = vld [vmem:[%s597 + $0x20] sm:$0xf]
        %v607 = vld [vmem:[%s597 + $0x24] sm:$0xf]
        %v608 = vld [vmem:[%s597 + $0x28] sm:$0xf]
        %v609 = vld [vmem:[%s597 + $0x2c] sm:$0xf]
        %v610 = vld [vmem:[%s597 + $0x30] sm:$0xf]
        %v611 = vld [vmem:[%s597 + $0x34] sm:$0xf]
        %v612 = vld [vmem:[%s597 + $0x38] sm:$0xf]
        %v613 = vld [vmem:[%s597 + $0x3c] sm:$0xf]
        %v630 = vunpack.c.l.b16 %v598
        %v631 = vunpack.c.l.b16 %v599
        %v632 = vunpack.c.l.b16 %v600
        %v633 = vunpack.c.l.b16 %v601
        %v634 = vunpack.c.l.b16 %v602
        %v635 = vunpack.c.l.b16 %v603
        %v636 = vunpack.c.l.b16 %v604
        %v637 = vunpack.c.l.b16 %v605
        %v638 = vunpack.c.l.b16 %v606
        %v639 = vunpack.c.l.b16 %v607
        %v640 = vunpack.c.l.b16 %v608
        %v641 = vunpack.c.l.b16 %v609
        %v642 = vunpack.c.l.b16 %v610
        %v643 = vunpack.c.l.b16 %v611
        %v644 = vunpack.c.l.b16 %v612
        %v645 = vunpack.c.l.b16 %v613
        %v646 = vpack.c.b16 %v631, %v630
        %v647 = vpack.c.b16 %v633, %v632
        %v648 = vpack.c.b16 %v635, %v634
        %v649 = vpack.c.b16 %v637, %v636
        %v650 = vpack.c.b16 %v639, %v638
        %v651 = vpack.c.b16 %v641, %v640
        %v652 = vpack.c.b16 %v643, %v642
        %v653 = vpack.c.b16 %v645, %v644
        %662 = vmatprep.subr.bf16.mxu0 0
        %663 = vmatpush1.bf16.msra.mxu0 %v646
        %664 = vmatprep.subr.bf16.mxu0 0
        %665 = vmatpush1.bf16.msra.mxu0 %v647
        %666 = vmatprep.subr.bf16.mxu0 0
        %667 = vmatpush1.bf16.msra.mxu0 %v648
        %668 = vmatprep.subr.bf16.mxu0 0
        %669 = vmatpush1.bf16.msra.mxu0 %v649
        %670 = vmatprep.subr.bf16.mxu0 0
        %671 = vmatpush1.bf16.msra.mxu0 %v650
        %672 = vmatprep.subr.bf16.mxu0 0
        %673 = vmatpush1.bf16.msra.mxu0 %v651
        %674 = vmatprep.subr.bf16.mxu0 0
        %675 = vmatpush1.bf16.msra.mxu0 %v652
        %676 = vmatprep.subr.bf16.mxu0 0
        %677 = vmatpush1.bf16.msra.mxu0 %v653
        %678 = vmatprep.subr.bf16.mxu0 0
        %679 = vmatpush1.bf16.msra.mxu0 0
        %680 = vmatprep.subr.bf16.mxu0 0
        %681 = vmatpush1.bf16.msra.mxu0 0
        %682 = vmatprep.subr.bf16.mxu0 0
        %683 = vmatpush1.bf16.msra.mxu0 0
        %684 = vmatprep.subr.bf16.mxu0 0
        %685 = vmatpush1.bf16.msra.mxu0 0
        %686 = vmatprep.subr.bf16.mxu0 0
        %687 = vmatpush1.bf16.msra.mxu0 0
        %688 = vmatprep.subr.bf16.mxu0 0
        %689 = vmatpush1.bf16.msra.mxu0 0
        %690 = vmatprep.subr.bf16.mxu0 0
        %691 = vmatpush1.bf16.msra.mxu0 0
        %692 = vmatprep.subr.bf16.mxu0 0
        %693 = vmatpush1.bf16.msra.mxu0 0
        %694 = vmatprep.mubr.bf16.mxu0 0
        %695 = vmatmul.mubr.bf16.gmra.mrb[0].mxu0 %v596
        %v696 = vpop.f32.mrb[0].mxu0
        %v697 = vadd.f32 0.0, %v696
        %v698 = vpop.f32.mrb[0].mxu0
        %v699 = vpop.f32.mrb[0].mxu0
        %v700 = vpop.f32.mrb[0].mxu0
        %701 = vdwg.mxu0
        %v702 = vpack.c.bf16 %v697, %v697
        %s703 = scalar_lea.vmem %s4, 1
        %v704 = vld [vmem:[%s703] sm:$0x1]
        %v705 = vpack.c.bf16 %v704, %v704
        %v707 = vpack.i.b16 %v705, %v705
        %v709 = vlaneseq
        %v710 = vshrl.u32 %v709, 7
        %v711 = vsub.s32 0, %v710
        %v712 = vrot.slane %v707, %v711
        %v713 = vadd.bf16 %v702, %v712
        %v714 = vtanh.bf16.pop %v713
        %s715 = scalar_lea.vmem [#allocation2], 128
        %v716 = vld [vmem:[%s715] sm:$0xf]
        %v717 = vld [vmem:[%s715 + $0x4] sm:$0xf]
        %v718 = vld [vmem:[%s715 + $0x8] sm:$0xf]
        %v719 = vld [vmem:[%s715 + $0xc] sm:$0xf]
        %v720 = vld [vmem:[%s715 + $0x10] sm:$0xf]
        %v721 = vld [vmem:[%s715 + $0x14] sm:$0xf]
        %v722 = vld [vmem:[%s715 + $0x18] sm:$0xf]
        %v723 = vld [vmem:[%s715 + $0x1c] sm:$0xf]
        %v724 = vld [vmem:[%s715 + $0x20] sm:$0xf]
        %v725 = vld [vmem:[%s715 + $0x24] sm:$0xf]
        %v726 = vld [vmem:[%s715 + $0x28] sm:$0xf]
        %v727 = vld [vmem:[%s715 + $0x2c] sm:$0xf]
        %v728 = vld [vmem:[%s715 + $0x30] sm:$0xf]
        %v729 = vld [vmem:[%s715 + $0x34] sm:$0xf]
        %v730 = vld [vmem:[%s715 + $0x38] sm:$0xf]
        %v731 = vld [vmem:[%s715 + $0x3c] sm:$0xf]
        %v748 = vunpack.c.l.b16 %v716
        %v749 = vunpack.c.l.b16 %v717
        %v750 = vunpack.c.l.b16 %v718
        %v751 = vunpack.c.l.b16 %v719
        %v752 = vunpack.c.l.b16 %v720
        %v753 = vunpack.c.l.b16 %v721
        %v754 = vunpack.c.l.b16 %v722
        %v755 = vunpack.c.l.b16 %v723
        %v756 = vunpack.c.l.b16 %v724
        %v757 = vunpack.c.l.b16 %v725
        %v758 = vunpack.c.l.b16 %v726
        %v759 = vunpack.c.l.b16 %v727
        %v760 = vunpack.c.l.b16 %v728
        %v761 = vunpack.c.l.b16 %v729
        %v762 = vunpack.c.l.b16 %v730
        %v763 = vunpack.c.l.b16 %v731
        %v764 = vpack.c.b16 %v749, %v748
        %v765 = vpack.c.b16 %v751, %v750
        %v766 = vpack.c.b16 %v753, %v752
        %v767 = vpack.c.b16 %v755, %v754
        %v768 = vpack.c.b16 %v757, %v756
        %v769 = vpack.c.b16 %v759, %v758
        %v770 = vpack.c.b16 %v761, %v760
        %v771 = vpack.c.b16 %v763, %v762
        %780 = vmatprep.subr.bf16.mxu0 0
        %781 = vmatpush1.bf16.msra.mxu0 %v764
        %782 = vmatprep.subr.bf16.mxu0 0
        %783 = vmatpush1.bf16.msra.mxu0 %v765
        %784 = vmatprep.subr.bf16.mxu0 0
        %785 = vmatpush1.bf16.msra.mxu0 %v766
        %786 = vmatprep.subr.bf16.mxu0 0
        %787 = vmatpush1.bf16.msra.mxu0 %v767
        %788 = vmatprep.subr.bf16.mxu0 0
        %789 = vmatpush1.bf16.msra.mxu0 %v768
        %790 = vmatprep.subr.bf16.mxu0 0
        %791 = vmatpush1.bf16.msra.mxu0 %v769
        %792 = vmatprep.subr.bf16.mxu0 0
        %793 = vmatpush1.bf16.msra.mxu0 %v770
        %794 = vmatprep.subr.bf16.mxu0 0
        %795 = vmatpush1.bf16.msra.mxu0 %v771
        %796 = vmatprep.subr.bf16.mxu0 0
        %797 = vmatpush1.bf16.msra.mxu0 0
        %798 = vmatprep.subr.bf16.mxu0 0
        %799 = vmatpush1.bf16.msra.mxu0 0
        %800 = vmatprep.subr.bf16.mxu0 0
        %801 = vmatpush1.bf16.msra.mxu0 0
        %802 = vmatprep.subr.bf16.mxu0 0
        %803 = vmatpush1.bf16.msra.mxu0 0
        %804 = vmatprep.subr.bf16.mxu0 0
        %805 = vmatpush1.bf16.msra.mxu0 0
        %806 = vmatprep.subr.bf16.mxu0 0
        %807 = vmatpush1.bf16.msra.mxu0 0
        %808 = vmatprep.subr.bf16.mxu0 0
        %809 = vmatpush1.bf16.msra.mxu0 0
        %810 = vmatprep.subr.bf16.mxu0 0
        %811 = vmatpush1.bf16.msra.mxu0 0
        %812 = vmatprep.mubr.bf16.mxu0 0
        %813 = vmatmul.mubr.bf16.gmra.mrb[0].mxu0 %v714
        %v814 = vpop.f32.mrb[0].mxu0
        %v815 = vadd.f32 0.0, %v814
        %v816 = vpop.f32.mrb[0].mxu0
        %v817 = vpop.f32.mrb[0].mxu0
        %v818 = vpop.f32.mrb[0].mxu0
        %819 = vdwg.mxu0
        %v820 = vpack.c.bf16 %v815, %v815
        %s821 = scalar_lea.vmem %s4, 2
        %v822 = vld [vmem:[%s821] sm:$0x1]
        %v823 = vpack.c.bf16 %v822, %v822
        %v825 = vpack.i.b16 %v823, %v823
        %v827 = vlaneseq
        %v828 = vshrl.u32 %v827, 7
        %v829 = vsub.s32 0, %v828
        %v830 = vrot.slane %v825, %v829
        %v831 = vadd.bf16 %v820, %v830
        %v832 = vtanh.bf16.pop %v831
        %s833 = scalar_lea.vmem [#allocation2], 192
        %v834 = vld [vmem:[%s833] sm:$0xf]
        %v835 = vld [vmem:[%s833 + $0x4] sm:$0xf]
        %v836 = vld [vmem:[%s833 + $0x8] sm:$0xf]
        %v837 = vld [vmem:[%s833 + $0xc] sm:$0xf]
        %v838 = vld [vmem:[%s833 + $0x10] sm:$0xf]
        %v839 = vld [vmem:[%s833 + $0x14] sm:$0xf]
        %v840 = vld [vmem:[%s833 + $0x18] sm:$0xf]
        %v841 = vld [vmem:[%s833 + $0x1c] sm:$0xf]
        %v842 = vld [vmem:[%s833 + $0x20] sm:$0xf]
        %v843 = vld [vmem:[%s833 + $0x24] sm:$0xf]
        %v844 = vld [vmem:[%s833 + $0x28] sm:$0xf]
        %v845 = vld [vmem:[%s833 + $0x2c] sm:$0xf]
        %v846 = vld [vmem:[%s833 + $0x30] sm:$0xf]
        %v847 = vld [vmem:[%s833 + $0x34] sm:$0xf]
        %v848 = vld [vmem:[%s833 + $0x38] sm:$0xf]
        %v849 = vld [vmem:[%s833 + $0x3c] sm:$0xf]
        %v866 = vunpack.c.l.b16 %v834
        %v867 = vunpack.c.l.b16 %v835
        %v868 = vunpack.c.l.b16 %v836
        %v869 = vunpack.c.l.b16 %v837
        %v870 = vunpack.c.l.b16 %v838
        %v871 = vunpack.c.l.b16 %v839
        %v872 = vunpack.c.l.b16 %v840
        %v873 = vunpack.c.l.b16 %v841
        %v874 = vunpack.c.l.b16 %v842
        %v875 = vunpack.c.l.b16 %v843
        %v876 = vunpack.c.l.b16 %v844
        %v877 = vunpack.c.l.b16 %v845
        %v878 = vunpack.c.l.b16 %v846
        %v879 = vunpack.c.l.b16 %v847
        %v880 = vunpack.c.l.b16 %v848
        %v881 = vunpack.c.l.b16 %v849
        %v882 = vpack.c.b16 %v867, %v866
        %v883 = vpack.c.b16 %v869, %v868
        %v884 = vpack.c.b16 %v871, %v870
        %v885 = vpack.c.b16 %v873, %v872
        %v886 = vpack.c.b16 %v875, %v874
        %v887 = vpack.c.b16 %v877, %v876
        %v888 = vpack.c.b16 %v879, %v878
        %v889 = vpack.c.b16 %v881, %v880
        %898 = vmatprep.subr.bf16.mxu0 0
        %899 = vmatpush1.bf16.msra.mxu0 %v882
        %900 = vmatprep.subr.bf16.mxu0 0
        %901 = vmatpush1.bf16.msra.mxu0 %v883
        %902 = vmatprep.subr.bf16.mxu0 0
        %903 = vmatpush1.bf16.msra.mxu0 %v884
        %904 = vmatprep.subr.bf16.mxu0 0
        %905 = vmatpush1.bf16.msra.mxu0 %v885
        %906 = vmatprep.subr.bf16.mxu0 0
        %907 = vmatpush1.bf16.msra.mxu0 %v886
        %908 = vmatprep.subr.bf16.mxu0 0
        %909 = vmatpush1.bf16.msra.mxu0 %v887
        %910 = vmatprep.subr.bf16.mxu0 0
        %911 = vmatpush1.bf16.msra.mxu0 %v888
        %912 = vmatprep.subr.bf16.mxu0 0
        %913 = vmatpush1.bf16.msra.mxu0 %v889
        %914 = vmatprep.subr.bf16.mxu0 0
        %915 = vmatpush1.bf16.msra.mxu0 0
        %916 = vmatprep.subr.bf16.mxu0 0
        %917 = vmatpush1.bf16.msra.mxu0 0
        %918 = vmatprep.subr.bf16.mxu0 0
        %919 = vmatpush1.bf16.msra.mxu0 0
        %920 = vmatprep.subr.bf16.mxu0 0
        %921 = vmatpush1.bf16.msra.mxu0 0
        %922 = vmatprep.subr.bf16.mxu0 0
        %923 = vmatpush1.bf16.msra.mxu0 0
        %924 = vmatprep.subr.bf16.mxu0 0
        %925 = vmatpush1.bf16.msra.mxu0 0
        %926 = vmatprep.subr.bf16.mxu0 0
        %927 = vmatpush1.bf16.msra.mxu0 0
        %928 = vmatprep.subr.bf16.mxu0 0
        %929 = vmatpush1.bf16.msra.mxu0 0
        %930 = vmatprep.mubr.bf16.mxu0 0
        %931 = vmatmul.mubr.bf16.gmra.mrb[0].mxu0 %v832
        %v932 = vpop.f32.mrb[0].mxu0
        %v933 = vadd.f32 0.0, %v932
        %v934 = vpop.f32.mrb[0].mxu0
        %v935 = vpop.f32.mrb[0].mxu0
        %v936 = vpop.f32.mrb[0].mxu0
        %937 = vdwg.mxu0
        %v938 = vpack.c.bf16 %v933, %v933
        %s939 = scalar_lea.vmem %s4, 3
        %v940 = vld [vmem:[%s939] sm:$0x1]
        %v941 = vpack.c.bf16 %v940, %v940
        %v943 = vpack.i.b16 %v941, %v941
        %v945 = vlaneseq
        %v946 = vshrl.u32 %v945, 7
        %v947 = vsub.s32 0, %v946
        %v948 = vrot.slane %v943, %v947
        %v949 = vadd.bf16 %v938, %v948
        %v950 = vtanh.bf16.pop %v949
        %s951 = scalar_lea.vmem [#allocation2], 256
        %v952 = vld [vmem:[%s951] sm:$0xf]
        %v953 = vld [vmem:[%s951 + $0x4] sm:$0xf]
        %v954 = vld [vmem:[%s951 + $0x8] sm:$0xf]
        %v955 = vld [vmem:[%s951 + $0xc] sm:$0xf]
        %v956 = vld [vmem:[%s951 + $0x10] sm:$0xf]
        %v957 = vld [vmem:[%s951 + $0x14] sm:$0xf]
        %v958 = vld [vmem:[%s951 + $0x18] sm:$0xf]
        %v959 = vld [vmem:[%s951 + $0x1c] sm:$0xf]
        %v960 = vld [vmem:[%s951 + $0x20] sm:$0xf]
        %v961 = vld [vmem:[%s951 + $0x24] sm:$0xf]
        %v962 = vld [vmem:[%s951 + $0x28] sm:$0xf]
        %v963 = vld [vmem:[%s951 + $0x2c] sm:$0xf]
        %v964 = vld [vmem:[%s951 + $0x30] sm:$0xf]
        %v965 = vld [vmem:[%s951 + $0x34] sm:$0xf]
        %v966 = vld [vmem:[%s951 + $0x38] sm:$0xf]
        %v967 = vld [vmem:[%s951 + $0x3c] sm:$0xf]
        %v984 = vunpack.c.l.b16 %v952
        %v985 = vunpack.c.l.b16 %v953
        %v986 = vunpack.c.l.b16 %v954
        %v987 = vunpack.c.l.b16 %v955
        %v988 = vunpack.c.l.b16 %v956
        %v989 = vunpack.c.l.b16 %v957
        %v990 = vunpack.c.l.b16 %v958
        %v991 = vunpack.c.l.b16 %v959
        %v992 = vunpack.c.l.b16 %v960
        %v993 = vunpack.c.l.b16 %v961
        %v994 = vunpack.c.l.b16 %v962
        %v995 = vunpack.c.l.b16 %v963
        %v996 = vunpack.c.l.b16 %v964
        %v997 = vunpack.c.l.b16 %v965
        %v998 = vunpack.c.l.b16 %v966
        %v999 = vunpack.c.l.b16 %v967
        %v1000 = vpack.c.b16 %v985, %v984
        %v1001 = vpack.c.b16 %v987, %v986
        %v1002 = vpack.c.b16 %v989, %v988
        %v1003 = vpack.c.b16 %v991, %v990
        %v1004 = vpack.c.b16 %v993, %v992
        %v1005 = vpack.c.b16 %v995, %v994
        %v1006 = vpack.c.b16 %v997, %v996
        %v1007 = vpack.c.b16 %v999, %v998
        %1016 = vmatprep.subr.bf16.mxu0 0
        %1017 = vmatpush1.bf16.msra.mxu0 %v1000
        %1018 = vmatprep.subr.bf16.mxu0 0
        %1019 = vmatpush1.bf16.msra.mxu0 %v1001
        %1020 = vmatprep.subr.bf16.mxu0 0
        %1021 = vmatpush1.bf16.msra.mxu0 %v1002
        %1022 = vmatprep.subr.bf16.mxu0 0
        %1023 = vmatpush1.bf16.msra.mxu0 %v1003
        %1024 = vmatprep.subr.bf16.mxu0 0
        %1025 = vmatpush1.bf16.msra.mxu0 %v1004
        %1026 = vmatprep.subr.bf16.mxu0 0
        %1027 = vmatpush1.bf16.msra.mxu0 %v1005
        %1028 = vmatprep.subr.bf16.mxu0 0
        %1029 = vmatpush1.bf16.msra.mxu0 %v1006
        %1030 = vmatprep.subr.bf16.mxu0 0
        %1031 = vmatpush1.bf16.msra.mxu0 %v1007
        %1032 = vmatprep.subr.bf16.mxu0 0
        %1033 = vmatpush1.bf16.msra.mxu0 0
        %1034 = vmatprep.subr.bf16.mxu0 0
        %1035 = vmatpush1.bf16.msra.mxu0 0
        %1036 = vmatprep.subr.bf16.mxu0 0
        %1037 = vmatpush1.bf16.msra.mxu0 0
        %1038 = vmatprep.subr.bf16.mxu0 0
        %1039 = vmatpush1.bf16.msra.mxu0 0
        %1040 = vmatprep.subr.bf16.mxu0 0
        %1041 = vmatpush1.bf16.msra.mxu0 0
        %1042 = vmatprep.subr.bf16.mxu0 0
        %1043 = vmatpush1.bf16.msra.mxu0 0
        %1044 = vmatprep.subr.bf16.mxu0 0
        %1045 = vmatpush1.bf16.msra.mxu0 0
        %1046 = vmatprep.subr.bf16.mxu0 0
        %1047 = vmatpush1.bf16.msra.mxu0 0
        %1048 = vmatprep.mubr.bf16.mxu0 0
        %1049 = vmatmul.mubr.bf16.gmra.mrb[0].mxu0 %v950
        %v1050 = vpop.f32.mrb[0].mxu0
        %v1051 = vadd.f32 0.0, %v1050
        %v1052 = vpop.f32.mrb[0].mxu0
        %v1053 = vpop.f32.mrb[0].mxu0
        %v1054 = vpop.f32.mrb[0].mxu0
        %1055 = vdwg.mxu0
        %v1056 = vpack.c.bf16 %v1051, %v1051
        %s1057 = scalar_lea.vmem %s4, 4
        %v1058 = vld [vmem:[%s1057] sm:$0x1]
        %v1059 = vpack.c.bf16 %v1058, %v1058
        %v1061 = vpack.i.b16 %v1059, %v1059
        %v1063 = vlaneseq
        %v1064 = vshrl.u32 %v1063, 7
        %v1065 = vsub.s32 0, %v1064
        %v1066 = vrot.slane %v1061, %v1065
        %v1067 = vadd.bf16 %v1056, %v1066
        %v1068 = vtanh.bf16.pop %v1067
        %v1069 = vld [vmem:[%s5] sm:$0xf]
        %v1070 = vld [vmem:[%s5 + $0x4] sm:$0xf]
        %v1071 = vld [vmem:[%s5 + $0x8] sm:$0xf]
        %v1072 = vld [vmem:[%s5 + $0xc] sm:$0xf]
        %v1073 = vld [vmem:[%s5 + $0x10] sm:$0xf]
        %v1074 = vld [vmem:[%s5 + $0x14] sm:$0xf]
        %v1075 = vld [vmem:[%s5 + $0x18] sm:$0xf]
        %v1076 = vld [vmem:[%s5 + $0x1c] sm:$0xf]
        %v1077 = vld [vmem:[%s5 + $0x20] sm:$0xf]
        %v1078 = vld [vmem:[%s5 + $0x24] sm:$0xf]
        %v1079 = vld [vmem:[%s5 + $0x28] sm:$0xf]
        %v1080 = vld [vmem:[%s5 + $0x2c] sm:$0xf]
        %v1081 = vld [vmem:[%s5 + $0x30] sm:$0xf]
        %v1082 = vld [vmem:[%s5 + $0x34] sm:$0xf]
        %v1083 = vld [vmem:[%s5 + $0x38] sm:$0xf]
        %v1084 = vld [vmem:[%s5 + $0x3c] sm:$0xf]
        %v1085 = vld [vmem:[%s6] sm:$0x1]
        %v1087 = vlaneseq
        %v1088 = vshrl.u32 %v1087, 7
        %v1089 = vsub.s32 0, %v1088
        %v1090 = vrot.slane %v1085, %v1089
        %v1108 = vunpack.c.l.b16 %v1069
        %v1109 = vunpack.c.l.b16 %v1070
        %v1110 = vunpack.c.l.b16 %v1071
        %v1111 = vunpack.c.l.b16 %v1072
        %v1112 = vunpack.c.l.b16 %v1073
        %v1113 = vunpack.c.l.b16 %v1074
        %v1114 = vunpack.c.l.b16 %v1075
        %v1115 = vunpack.c.l.b16 %v1076
        %v1116 = vunpack.c.l.b16 %v1077
        %v1117 = vunpack.c.l.b16 %v1078
        %v1118 = vunpack.c.l.b16 %v1079
        %v1119 = vunpack.c.l.b16 %v1080
        %v1120 = vunpack.c.l.b16 %v1081
        %v1121 = vunpack.c.l.b16 %v1082
        %v1122 = vunpack.c.l.b16 %v1083
        %v1123 = vunpack.c.l.b16 %v1084
        %v1124 = vpack.c.b16 %v1109, %v1108
        %v1125 = vpack.c.b16 %v1111, %v1110
        %v1126 = vpack.c.b16 %v1113, %v1112
        %v1127 = vpack.c.b16 %v1115, %v1114
        %v1128 = vpack.c.b16 %v1117, %v1116
        %v1129 = vpack.c.b16 %v1119, %v1118
        %v1130 = vpack.c.b16 %v1121, %v1120
        %v1131 = vpack.c.b16 %v1123, %v1122
        %1140 = vmatprep.subr.bf16.mxu0 0
        %1141 = vmatpush1.bf16.msra.mxu0 %v1124
        %1142 = vmatprep.subr.bf16.mxu0 0
        %1143 = vmatpush1.bf16.msra.mxu0 %v1125
        %1144 = vmatprep.subr.bf16.mxu0 0
        %1145 = vmatpush1.bf16.msra.mxu0 %v1126
        %1146 = vmatprep.subr.bf16.mxu0 0
        %1147 = vmatpush1.bf16.msra.mxu0 %v1127
        %1148 = vmatprep.subr.bf16.mxu0 0
        %1149 = vmatpush1.bf16.msra.mxu0 %v1128
        %1150 = vmatprep.subr.bf16.mxu0 0
        %1151 = vmatpush1.bf16.msra.mxu0 %v1129
        %1152 = vmatprep.subr.bf16.mxu0 0
        %1153 = vmatpush1.bf16.msra.mxu0 %v1130
        %1154 = vmatprep.subr.bf16.mxu0 0
        %1155 = vmatpush1.bf16.msra.mxu0 %v1131
        %1156 = vmatprep.subr.bf16.mxu0 0
        %1157 = vmatpush1.bf16.msra.mxu0 0
        %1158 = vmatprep.subr.bf16.mxu0 0
        %1159 = vmatpush1.bf16.msra.mxu0 0
        %1160 = vmatprep.subr.bf16.mxu0 0
        %1161 = vmatpush1.bf16.msra.mxu0 0
        %1162 = vmatprep.subr.bf16.mxu0 0
        %1163 = vmatpush1.bf16.msra.mxu0 0
        %1164 = vmatprep.subr.bf16.mxu0 0
        %1165 = vmatpush1.bf16.msra.mxu0 0
        %1166 = vmatprep.subr.bf16.mxu0 0
        %1167 = vmatpush1.bf16.msra.mxu0 0
        %1168 = vmatprep.subr.bf16.mxu0 0
        %1169 = vmatpush1.bf16.msra.mxu0 0
        %1170 = vmatprep.subr.bf16.mxu0 0
        %1171 = vmatpush1.bf16.msra.mxu0 0
        %1172 = vmatprep.mubr.bf16.mxu0 0
        %1173 = vmatmul.mubr.bf16.gmra.mrb[0].mxu0 %v1068
        %v1174 = vpop.f32.mrb[0].mxu0
        %v1175 = vadd.f32 %v1090, %v1174
        %v1176 = vpop.f32.mrb[0].mxu0
        %v1177 = vpop.f32.mrb[0].mxu0
        %v1178 = vpop.f32.mrb[0].mxu0
        %1179 = vdwg.mxu0
        %vm1180 = vcmask 64512
        %1181 = vst.msk [vmem:[%s291] sm:$0xff] %vm1180, %v1175
        %p1182 = scmp.lt.s32.totalorder %s19, 1
        %s1183 = scalar_select %p1182, %s19, 1
        %s1184 = smul.addr %s1183, 8
        %s1185 = scalar_lea.vmem %s7, %s1184
        // Predicated region
        $region53: #{_lambda_.1} parent=47 // pred_check
          %p1186 = pneg %p189
        $region54: #{_lambda_.1} parent=47 // pred_check_branch
          %1188 = sbr.rel (%p1186) target = $region56
        $region55: #{_lambda_.1} parent=47 // pred_region
          _
        $region56: #{_lambda_.1} parent=47 // pred_fallthru
          _
      $region48: #{_lambda_.1} parent=5 // pred_fallthru
        _
      %p1189 = scmp.le.s32.totalorder 2, %s14
      // Predicated region
      $region57: #{_lambda_.1} parent=5 // pred_check
        %p1190 = pneg %p1189
      $region58: #{_lambda_.1} parent=5 // pred_check_branch
        %1192 = sbr.rel (%p1190) target = $region60
      $region59: #{_lambda_.1} parent=5 // pred_region
        %s1193 = ssub.s32 %s14, 2
        // Predicated region
        $region61: #{_lambda_.1} parent=59 // pred_check
          %p1194 = pneg %p195
        $region62: #{_lambda_.1} parent=59 // pred_check_branch
          %1196 = sbr.rel (%p1194) target = $region64
        $region63: #{_lambda_.1} parent=59 // pred_region
          %p1197 = scmp.lt.s32.totalorder %s20, 1
          %s1198 = scalar_select %p1197, %s20, 1
          %s1199 = smul.addr %s1198, 8
          %s1200 = scalar_lea.vmem %s7, %s1199
        $region64: #{_lambda_.1} parent=59 // pred_fallthru
          _
      $region60: #{_lambda_.1} parent=5 // pred_fallthru
        _
    $region6: #{_lambda_.1} parent=1 // loop_footer
      %s18 = sadd.s32 1, %s14
    $region7: #{_lambda_.1} parent=1 // loop_footer_branch
      %13 = sbr.rel target = $region3
    $region8: #{_lambda_.1} parent=1 // loop_exit
      _
    %1201 = vsyncpa [#allocation3], 1
    %s1202 = scalar_lea.sflag [#allocation3], 1
    %1203 = vsyncpa %s1202, 1

</llo_original>
